<compile_context>
chip_gen: v7x
topology: tpu7x:2x2x1
jax: 0.10.0
libtpu: 0.0.40
codegen_flags: <defaults>
</compile_context>

<pallas_src>
import jax
import jax.numpy as jnp
from jax.experimental import pallas as pl
from jax.experimental.pallas import tpu as pltpu

BN_EPS = 1e-5

_VMEM_LIMIT_BYTES = 48 * 1024 * 1024          # < 64 MiB physical on v7x, >> 16 MiB v5e default
_WORKING_VMEM_BUDGET = 36 * 1024 * 1024       # double-buffered x+out block bytes must fit here
_TARGET_STEP_BYTES = 4 * 1024 * 1024          # amortize ~0.35 us per-grid-step overhead (v7x)
_LANE_LADDER = (65536, 32768, 16384, 8192, 4096, 2048, 1024, 512, 256, 128)
_MAX_B_TILE = 16                              # keeps the in-kernel batch unroll small


def _largest_divisor_leq(n: int, cap: int) -> int:
    cap = max(1, min(n, cap))
    for d in range(cap, 0, -1):
        if n % d == 0:
            return d
    return 1


def _choose_tiling(N: int, C_in: int, C_out: int, L: int):
    """Returns (l_tile, b_tile, n_splits)."""
    bytes_per_lane = (C_in + C_out) * 4
    if L < 128:
        l_tile = L                           # lane width < 128 only for tiny L; batch blocking
    else:                                    # is the lever there.
        l_tile = 128
        for t in _LANE_LADDER:               # largest lane-dense tile that fits the budget
            if t <= L and 2 * t * bytes_per_lane <= _WORKING_VMEM_BUDGET:
                l_tile = t
                break
    # Let v7x's second TensorCore share the stats pass (serializes harmlessly on 1-TC chips).
    n_splits = 2 if (N % 2 == 0 and N >= 2) else 1
    n_per_split = N // n_splits
    step_bytes = l_tile * bytes_per_lane
    desired_b = max(1, _TARGET_STEP_BYTES // step_bytes)
    max_b_vmem = max(1, _WORKING_VMEM_BUDGET // (2 * step_bytes))
    desired_b = min(desired_b, max_b_vmem, _MAX_B_TILE, n_per_split)
    b_tile = _largest_divisor_leq(n_per_split, desired_b)
    return l_tile, b_tile, n_splits


def _make_stats_kernel(L: int, l_tile: int, ragged: bool):
    def kernel(ref_ref, x_ref, sum_ref, sq_ref):
        # ref_ref: (C_in, 1)              per-channel shift reference (numerical stability)
        # x_ref:   (b_tile, C_in, l_tile) input slab
        # sum_ref: (C_in, 1)              running sum(x - ref)      (resident accumulator)
        # sq_ref:  (C_in, C_in)           running (x-ref)(x-ref)^T  (resident accumulator)
        @pl.when(jnp.logical_and(pl.program_id(1) == 0, pl.program_id(2) == 0))
        def _init():
            sum_ref[...] = jnp.zeros_like(sum_ref)
            sq_ref[...] = jnp.zeros_like(sq_ref)

        ref = ref_ref[...]
        if ragged:
            lane = jax.lax.broadcasted_iota(jnp.int32, (x_ref.shape[1], l_tile), 1)
            valid = (pl.program_id(2) * l_tile + lane) < L

        b_tile = x_ref.shape[0]
        for i in range(b_tile):              # trace-time unroll; b_tile <= _MAX_B_TILE
            xc = x_ref[i] - ref              # (C_in, l_tile)
            if ragged:
                xc = jnp.where(valid, xc, 0.0)
            sum_ref[...] += jnp.sum(xc, axis=1, keepdims=True)
            # (x-ref)(x-ref)^T without materializing a transpose: contract lane axis of both.
            sq_ref[...] += jax.lax.dot_general(
                xc, xc, (((1,), (1,)), ((), ())), preferred_element_type=jnp.float32
            )

    return kernel


def _apply_kernel(ws_ref, shift_ref, x_ref, o_ref):
    # ws_ref:    (C_out, C_in)            BN-scale-folded conv weights
    # shift_ref: (C_out, 1)               BN shift (conv bias already cancelled)
    # x_ref:     (b_tile, C_in, l_tile)
    # o_ref:     (b_tile, C_out, l_tile)  lane-dense output slab
    ws = ws_ref[...]
    shift = shift_ref[...]
    for i in range(x_ref.shape[0]):          # trace-time unroll; keeps each matmul lane-dense
        y = jnp.dot(ws, x_ref[i], preferred_element_type=jnp.float32)
        o_ref[i] = jnp.maximum(y + shift, 0.0).astype(o_ref.dtype)


@jax.jit
def linear1layer_forward(x, conv_w, conv_b, bn_gamma, bn_beta):
    """x: (N, C_in, L) f32 -> (N, C_out, L) f32.  Conv1d(k=1) + BatchNorm1d(train) + ReLU.

    conv_b is accepted for interface fidelity but cancels exactly in train-mode BatchNorm
    (y - mean_y removes it), so it never enters the kernels.
    """
    del conv_b  # mathematically cancelled by the BN mean subtraction
    N, C_in, L = x.shape
    C_out = conv_w.shape[0]
    x = x.astype(jnp.float32)

    l_tile, b_tile, n_splits = _choose_tiling(N, C_in, C_out, L)
    n_l = pl.cdiv(L, l_tile)
    ragged = (L % l_tile) != 0
    n_per_split = N // n_splits
    nb_per_split = n_per_split // b_tile
    count = N * L
    x_bytes = N * C_in * L * 4
    out_bytes = N * C_out * L * 4

    # Cheap per-channel reference (prefix mean) so the xx^T accumulation is numerically centered.
    ref = jnp.mean(x[: min(N, 4), :, : min(L, 256)], axis=(0, 2)).reshape(C_in, 1)

    # ---- pass 1: per-channel input statistics; one small streaming read of X ----
    psum, pxxt = pl.pallas_call(
        _make_stats_kernel(L, l_tile, ragged),
        grid=(n_splits, nb_per_split, n_l),
        in_specs=[
            pl.BlockSpec((C_in, 1), lambda c, n, l: (0, 0)),
            pl.BlockSpec(
                (b_tile, C_in, l_tile),
                lambda c, n, l: (c * nb_per_split + n, 0, l),
            ),
        ],
        out_specs=[
            pl.BlockSpec((None, C_in, 1), lambda c, n, l: (c, 0, 0)),
            pl.BlockSpec((None, C_in, C_in), lambda c, n, l: (c, 0, 0)),
        ],
        out_shape=[
            jax.ShapeDtypeStruct((n_splits, C_in, 1), jnp.float32),
            jax.ShapeDtypeStruct((n_splits, C_in, C_in), jnp.float32),
        ],
        compiler_params=pltpu.CompilerParams(
            dimension_semantics=("parallel", "arbitrary", "arbitrary"),
            vmem_limit_bytes=_VMEM_LIMIT_BYTES,
        ),
        cost_estimate=pl.CostEstimate(
            flops=count * (2 * C_in * C_in + 2 * C_in),
            transcendentals=0,
            bytes_accessed=x_bytes + 4 * n_splits * (C_in + C_in * C_in),
        ),
    )(ref, x)

    # ---- fold BN (train-mode batch stats) into per-output-channel scale/shift ----
    sum_c = jnp.sum(psum, axis=0)[:, 0]                      # (C_in,)  sum(x - ref)
    xxt_c = jnp.sum(pxxt, axis=0)                            # (C_in, C_in)
    mean_shift = sum_c / count                               # E[x - ref]
    mean_x = mean_shift + ref[:, 0]                          # (C_in,)
    cov_x = xxt_c / count - jnp.outer(mean_shift, mean_shift)  # shift-invariant covariance
    w2 = conv_w[:, :, 0].astype(jnp.float32)                 # (C_out, C_in)
    var_y = jnp.einsum("oc,cd,od->o", w2, cov_x, w2)         # biased batch variance of y
    var_y = jnp.maximum(var_y, 0.0)                          # guard tiny negative round-off
    scale = bn_gamma.astype(jnp.float32) * jax.lax.rsqrt(var_y + BN_EPS)
    w_scaled = w2 * scale[:, None]                           # fold BN scale into W
    shift = bn_beta.astype(jnp.float32) - (w2 @ mean_x) * scale
    shift2d = shift.reshape(C_out, 1)

    # ---- pass 2: out = relu((scale*W) @ x + shift) on lane-dense (C_out, l_tile) tiles ----
    out = pl.pallas_call(
        _apply_kernel,
        grid=(N // b_tile, n_l),
        in_specs=[
            pl.BlockSpec((C_out, C_in), lambda n, l: (0, 0)),
            pl.BlockSpec((C_out, 1), lambda n, l: (0, 0)),
            pl.BlockSpec((b_tile, C_in, l_tile), lambda n, l: (n, 0, l)),
        ],
        out_specs=pl.BlockSpec((b_tile, C_out, l_tile), lambda n, l: (n, 0, l)),
        out_shape=jax.ShapeDtypeStruct((N, C_out, L), jnp.float32),
        compiler_params=pltpu.CompilerParams(
            dimension_semantics=("parallel", "parallel"),
            vmem_limit_bytes=_VMEM_LIMIT_BYTES,
        ),
        cost_estimate=pl.CostEstimate(
            flops=2 * count * C_in * C_out + 2 * count * C_out,
            transcendentals=0,
            bytes_accessed=x_bytes + out_bytes + 4 * (C_out * C_in + C_out),
        ),
    )(w_scaled, shift2d, x)

    return out


if __name__ == "__main__":
    # Small shapes consistent with Conv1d input (N, C_in, L).
    N, C_in, C_out, L = 2, 4, 32, 16

    key = jax.random.PRNGKey(0)
    kx, kw, kb, kg, kbe = jax.random.split(key, 5)

    x = jax.random.normal(kx, (N, C_in, L), dtype=jnp.float32)
    conv_w = jax.random.normal(kw, (C_out, C_in, 1), dtype=jnp.float32) * 0.1
    conv_b = jax.random.normal(kb, (C_out,), dtype=jnp.float32) * 0.1
    bn_gamma = 1.0 + 0.05 * jax.random.normal(kg, (C_out,), dtype=jnp.float32)
    bn_beta = 0.05 * jax.random.normal(kbe, (C_out,), dtype=jnp.float32)

    out = linear1layer_forward(x, conv_w, conv_b, bn_gamma, bn_beta)
    jax.block_until_ready(out)

    # Pure-JAX reference (same semantics: conv1d k=1 + bias + train-mode BN + ReLU).
    y_ref = jnp.einsum("ncl,oc->nol", x, conv_w[:, :, 0]) + conv_b[None, :, None]
    mean = jnp.mean(y_ref, axis=(0, 2), keepdims=True)
    var = jnp.mean((y_ref - mean) ** 2, axis=(0, 2), keepdims=True)
    y_bn = (y_ref - mean) * jax.lax.rsqrt(var + BN_EPS)
    y_bn = y_bn * bn_gamma[None, :, None] + bn_beta[None, :, None]
    ref_out = jnp.maximum(y_bn, 0.0)

    assert out.shape == (N, C_out, L)
    assert jnp.allclose(out, ref_out, atol=1e-4, rtol=1e-4), float(jnp.max(jnp.abs(out - ref_out)))
    print("KERNEL_OK")
</pallas_src>

<mosaic_0001>
module attributes {stable_mosaic.version = 11 : i64} {
  func.func @kernel(%arg0: i32, %arg1: i32, %arg2: i32, %arg3: memref<4x1xf32, #tpu.memory_space<vmem>>, %arg4: memref<1x4x16xf32, #tpu.memory_space<vmem>>, %arg5: memref<1x4x1xf32, #tpu.memory_space<vmem>>, %arg6: memref<1x4x4xf32, #tpu.memory_space<vmem>>) attributes {dimension_semantics = [#tpu.dimension_semantics<parallel>, #tpu.dimension_semantics<arbitrary>, #tpu.dimension_semantics<arbitrary>], iteration_bounds = array<i64: 2, 1, 1>, scalar_prefetch = 0 : i64, scratch_operands = 0 : i64, tpu.core_type = #tpu.core_type<tc>, window_params = [{pipeline_mode = #tpu.pipeline_mode<synchronous>, transform_indices = @transform_0, window_bounds = array<i64: 4, 1>}, {transform_indices = @transform_1, window_bounds = array<i64: 1, 4, 16>}, {transform_indices = @transform_2, window_bounds = array<i64: 1, 4, 1>}, {transform_indices = @transform_3, window_bounds = array<i64: 1, 4, 4>}]} {
    %c0_i32 = arith.constant 0 : i32
    %0 = arith.cmpi eq, %arg1, %c0_i32 : i32
    %c0_i32_0 = arith.constant 0 : i32
    %1 = arith.cmpi eq, %arg2, %c0_i32_0 : i32
    %2 = arith.andi %0, %1 : i1
    %3 = arith.extui %2 : i1 to i32
    %c0_i32_1 = arith.constant 0 : i32
    %4 = arith.cmpi ne, %3, %c0_i32_1 : i32
    scf.if %4 {
      %cst_19 = arith.constant 0.000000e+00 : f32
      %25 = vector.broadcast %cst_19 : f32 to vector<4x1xf32>
      %c0_20 = arith.constant 0 : index
      %c0_21 = arith.constant 0 : index
      %c0_22 = arith.constant 0 : index
      %26 = vector.load %arg5[%c0_20, %c0_21, %c0_22] : memref<1x4x1xf32, #tpu.memory_space<vmem>>, vector<1x4x1xf32>
      %27 = vector.shape_cast %26 : vector<1x4x1xf32> to vector<4x1xf32>
      %28 = vector.shape_cast %25 : vector<4x1xf32> to vector<1x4x1xf32>
      tpu.vector_store %arg5[%c0_20, %c0_21, %c0_22], %28 {strides = array<i32>} : memref<1x4x1xf32, #tpu.memory_space<vmem>>, vector<1x4x1xf32>,
      %cst_23 = arith.constant 0.000000e+00 : f32
      %29 = vector.broadcast %cst_23 : f32 to vector<4x4xf32>
      %c0_24 = arith.constant 0 : index
      %c0_25 = arith.constant 0 : index
      %c0_26 = arith.constant 0 : index
      %30 = vector.load %arg6[%c0_24, %c0_25, %c0_26] : memref<1x4x4xf32, #tpu.memory_space<vmem>>, vector<1x4x4xf32>
      %31 = vector.shape_cast %30 : vector<1x4x4xf32> to vector<4x4xf32>
      %32 = vector.shape_cast %29 : vector<4x4xf32> to vector<1x4x4xf32>
      tpu.vector_store %arg6[%c0_24, %c0_25, %c0_26], %32 {strides = array<i32>} : memref<1x4x4xf32, #tpu.memory_space<vmem>>, vector<1x4x4xf32>,
    } else {
    }
    %c0 = arith.constant 0 : index
    %c0_2 = arith.constant 0 : index
    %5 = vector.load %arg3[%c0, %c0_2] : memref<4x1xf32, #tpu.memory_space<vmem>>, vector<4x1xf32>
    %c0_3 = arith.constant 0 : index
    %c0_4 = arith.constant 0 : index
    %c0_5 = arith.constant 0 : index
    %6 = vector.load %arg4[%c0_3, %c0_4, %c0_5] : memref<1x4x16xf32, #tpu.memory_space<vmem>>, vector<1x4x16xf32>
    %7 = vector.shape_cast %6 : vector<1x4x16xf32> to vector<4x16xf32>
    %8 = vector.broadcast %5 : vector<4x1xf32> to vector<4x16xf32>
    %9 = arith.subf %7, %8 : vector<4x16xf32>
    %c0_6 = arith.constant 0 : index
    %c0_7 = arith.constant 0 : index
    %c0_8 = arith.constant 0 : index
    %10 = vector.load %arg5[%c0_6, %c0_7, %c0_8] : memref<1x4x1xf32, #tpu.memory_space<vmem>>, vector<1x4x1xf32>
    %11 = vector.shape_cast %10 : vector<1x4x1xf32> to vector<4x1xf32>
    %cst = arith.constant dense<0.000000e+00> : vector<4xf32>
    %12 = vector.multi_reduction <add>, %9, %cst [1] : vector<4x16xf32> to vector<4xf32>
    %13 = vector.shape_cast %12 : vector<4xf32> to vector<4x1xf32>
    %14 = arith.addf %11, %13 : vector<4x1xf32>
    %c0_9 = arith.constant 0 : index
    %c0_10 = arith.constant 0 : index
    %c0_11 = arith.constant 0 : index
    %15 = vector.load %arg5[%c0_9, %c0_10, %c0_11] : memref<1x4x1xf32, #tpu.memory_space<vmem>>, vector<1x4x1xf32>
    %16 = vector.shape_cast %15 : vector<1x4x1xf32> to vector<4x1xf32>
    %17 = vector.shape_cast %14 : vector<4x1xf32> to vector<1x4x1xf32>
    tpu.vector_store %arg5[%c0_9, %c0_10, %c0_11], %17 {strides = array<i32>} : memref<1x4x1xf32, #tpu.memory_space<vmem>>, vector<1x4x1xf32>,
    %c0_12 = arith.constant 0 : index
    %c0_13 = arith.constant 0 : index
    %c0_14 = arith.constant 0 : index
    %18 = vector.load %arg6[%c0_12, %c0_13, %c0_14] : memref<1x4x4xf32, #tpu.memory_space<vmem>>, vector<1x4x4xf32>
    %19 = vector.shape_cast %18 : vector<1x4x4xf32> to vector<4x4xf32>
    %cst_15 = arith.constant dense<0.000000e+00> : vector<4x4xf32>
    %20 = tpu.matmul %9, %9, %cst_15 {dimension_numbers = #tpu.dot_dimension_numbers<[1], [1], [0], [0], [0, 0, 1, 0], [], []>} : vector<4x16xf32>, vector<4x16xf32>, vector<4x4xf32> -> vector<4x4xf32>
    %21 = arith.addf %19, %20 : vector<4x4xf32>
    %c0_16 = arith.constant 0 : index
    %c0_17 = arith.constant 0 : index
    %c0_18 = arith.constant 0 : index
    %22 = vector.load %arg6[%c0_16, %c0_17, %c0_18] : memref<1x4x4xf32, #tpu.memory_space<vmem>>, vector<1x4x4xf32>
    %23 = vector.shape_cast %22 : vector<1x4x4xf32> to vector<4x4xf32>
    %24 = vector.shape_cast %21 : vector<4x4xf32> to vector<1x4x4xf32>
    tpu.vector_store %arg6[%c0_16, %c0_17, %c0_18], %24 {strides = array<i32>} : memref<1x4x4xf32, #tpu.memory_space<vmem>>, vector<1x4x4xf32>,
    return
  }
  func.func @transform_0(%arg0: i32, %arg1: i32, %arg2: i32) -> (i32, i32) {
    %c0_i32 = arith.constant 0 : i32
    %c0_i32_0 = arith.constant 0 : i32
    %c0_i32_1 = arith.constant 0 : i32
    return %c0_i32, %c0_i32_0 : i32, i32
  }
  func.func @transform_1(%arg0: i32, %arg1: i32, %arg2: i32) -> (i32, i32, i32) {
    %c1_i32 = arith.constant 1 : i32
    %0 = arith.muli %arg0, %c1_i32 : i32
    %1 = arith.addi %0, %arg1 : i32
    %c0_i32 = arith.constant 0 : i32
    %c0_i32_0 = arith.constant 0 : i32
    return %1, %c0_i32, %arg2 : i32, i32, i32
  }
  func.func @transform_2(%arg0: i32, %arg1: i32, %arg2: i32) -> (i32, i32, i32) {
    %c0_i32 = arith.constant 0 : i32
    %c0_i32_0 = arith.constant 0 : i32
    %c0_i32_1 = arith.constant 0 : i32
    return %arg0, %c0_i32, %c0_i32_0 : i32, i32, i32
  }
  func.func @transform_3(%arg0: i32, %arg1: i32, %arg2: i32) -> (i32, i32, i32) {
    %c0_i32 = arith.constant 0 : i32
    %c0_i32_0 = arith.constant 0 : i32
    %c0_i32_1 = arith.constant 0 : i32
    return %arg0, %c0_i32, %c0_i32_0 : i32, i32, i32
  }
}

module attributes {stable_mosaic.version = 11 : i64} {
  func.func @_apply_kernel(%arg0: i32, %arg1: i32, %arg2: memref<32x4xf32, #tpu.memory_space<vmem>>, %arg3: memref<32x1xf32, #tpu.memory_space<vmem>>, %arg4: memref<1x4x16xf32, #tpu.memory_space<vmem>>, %arg5: memref<1x32x16xf32, #tpu.memory_space<vmem>>) attributes {dimension_semantics = [#tpu.dimension_semantics<parallel>, #tpu.dimension_semantics<parallel>], iteration_bounds = array<i64: 2, 1>, scalar_prefetch = 0 : i64, scratch_operands = 0 : i64, tpu.core_type = #tpu.core_type<tc>, window_params = [{pipeline_mode = #tpu.pipeline_mode<synchronous>, transform_indices = @transform_0, window_bounds = array<i64: 32, 4>}, {pipeline_mode = #tpu.pipeline_mode<synchronous>, transform_indices = @transform_1, window_bounds = array<i64: 32, 1>}, {transform_indices = @transform_2, window_bounds = array<i64: 1, 4, 16>}, {transform_indices = @transform_3, window_bounds = array<i64: 1, 32, 16>}]} {
    %c0 = arith.constant 0 : index
    %c0_0 = arith.constant 0 : index
    %0 = vector.load %arg2[%c0, %c0_0] : memref<32x4xf32, #tpu.memory_space<vmem>>, vector<32x4xf32>
    %c0_1 = arith.constant 0 : index
    %c0_2 = arith.constant 0 : index
    %1 = vector.load %arg3[%c0_1, %c0_2] : memref<32x1xf32, #tpu.memory_space<vmem>>, vector<32x1xf32>
    %c0_3 = arith.constant 0 : index
    %c0_4 = arith.constant 0 : index
    %c0_5 = arith.constant 0 : index
    %2 = vector.load %arg4[%c0_3, %c0_4, %c0_5] : memref<1x4x16xf32, #tpu.memory_space<vmem>>, vector<1x4x16xf32>
    %3 = vector.shape_cast %2 : vector<1x4x16xf32> to vector<4x16xf32>
    %cst = arith.constant dense<0.000000e+00> : vector<32x16xf32>
    %4 = tpu.matmul %0, %3, %cst {dimension_numbers = #tpu.dot_dimension_numbers<[1], [0], [0], [1], [0, 0, 1, 1], [], []>} : vector<32x4xf32>, vector<4x16xf32>, vector<32x16xf32> -> vector<32x16xf32>
    %5 = vector.broadcast %1 : vector<32x1xf32> to vector<32x16xf32>
    %6 = arith.addf %4, %5 : vector<32x16xf32>
    %cst_6 = arith.constant 0.000000e+00 : f32
    %7 = vector.broadcast %cst_6 : f32 to vector<32x16xf32>
    %8 = arith.maximumf %6, %7 : vector<32x16xf32>
    %c0_7 = arith.constant 0 : index
    %c0_8 = arith.constant 0 : index
    %c0_9 = arith.constant 0 : index
    %9 = vector.load %arg5[%c0_7, %c0_8, %c0_9] : memref<1x32x16xf32, #tpu.memory_space<vmem>>, vector<1x32x16xf32>
    %10 = vector.shape_cast %9 : vector<1x32x16xf32> to vector<32x16xf32>
    %11 = vector.shape_cast %8 : vector<32x16xf32> to vector<1x32x16xf32>
    tpu.vector_store %arg5[%c0_7, %c0_8, %c0_9], %11 {strides = array<i32>} : memref<1x32x16xf32, #tpu.memory_space<vmem>>, vector<1x32x16xf32>,
    return
  }
  func.func @transform_0(%arg0: i32, %arg1: i32) -> (i32, i32) {
    %c0_i32 = arith.constant 0 : i32
    %c0_i32_0 = arith.constant 0 : i32
    %c0_i32_1 = arith.constant 0 : i32
    return %c0_i32, %c0_i32_0 : i32, i32
  }
  func.func @transform_1(%arg0: i32, %arg1: i32) -> (i32, i32) {
    %c0_i32 = arith.constant 0 : i32
    %c0_i32_0 = arith.constant 0 : i32
    %c0_i32_1 = arith.constant 0 : i32
    return %c0_i32, %c0_i32_0 : i32, i32
  }
  func.func @transform_2(%arg0: i32, %arg1: i32) -> (i32, i32, i32) {
    %c0_i32 = arith.constant 0 : i32
    %c0_i32_0 = arith.constant 0 : i32
    return %arg0, %c0_i32, %arg1 : i32, i32, i32
  }
  func.func @transform_3(%arg0: i32, %arg1: i32) -> (i32, i32, i32) {
    %c0_i32 = arith.constant 0 : i32
    %c0_i32_0 = arith.constant 0 : i32
    return %arg0, %c0_i32, %arg1 : i32, i32, i32
  }
}

</mosaic_0001>

<llo_original>
// kernel: linear1layer_forward.2
$region0: #{linear1layer_forward.2}
  #allocation0 [shape = 'u32[]', space=smem, size = 0x4, offset = 0x4, fixed_abs, tag = 'smem constant byte address 0x4 - core index']
  #allocation1 [shape = 'u32[144,128]{1,0:T(1,128)}', space=vmem, size = 0x12000, scoped, tag = 'internal scratch']
  %s0 = inlined_call_operand.vmem [shape: f32[4,1], index: 0, kind: input, shape index: {}]
  %s1 = inlined_call_operand.vmem [shape: f32[2,4,16], index: 1, kind: input, shape index: {}]
  %s2 = inlined_call_operand.vmem [shape: f32[2,4,1], index: 2, kind: output, shape index: {0}]
  %s3 = inlined_call_operand.vmem [shape: f32[2,4,4], index: 3, kind: output, shape index: {1}]
  %4 = xla_tuple %s2, %s3
  %s5 = sld [smem:[#allocation0]]
  $region53: #{linear1layer_forward.2} parent=0
    _
  %s7 = ssub.s32 1, %s5
  %s8 = scalar_select 0, %s7, %s5
  loop: start=0, step=1, limit=4
  $region2: #{linear1layer_forward.2} parent=0 // loop_pre_header
    _
  $region3: #{linear1layer_forward.2} parent=0 // loop_header
    %s10 = sphi 0, %s14
    %p11 = scmp.ge.s32.totalorder %s10, 4
    %s17 = sphi 0, %s36
    %s18 = sphi 0, %s32
    %s19 = sphi 0, %s28
    %s20 = sphi 0, %s17
    %s21 = sphi 0, %s18
    %s22 = sphi 0, %s19
    %s23 = sphi 0, %s20
    %s24 = sphi 0, %s21
    %s25 = sphi 0, %s22
    %s37 = sphi 0, %s37
    %s39 = sphi 0, %s37
    %s40 = sphi 0, %s39
    %s54 = sphi 0, %s40
    %s64 = sphi 0, %s66
    %s67 = sphi 0, %s64
    %s68 = sphi 0, %s67
    %s84 = sphi 0, %s68
    %s90 = sphi 0, %s92
    %s93 = sphi 0, %s90
    %s94 = sphi 0, %s93
    %s110 = sphi 0, %s94
    %s116 = sphi 0, %s118
    %s119 = sphi 0, %s116
    %s120 = sphi 0, %s119
    %s136 = sphi 0, %s120
  $region4: #{linear1layer_forward.2} parent=0 // loop_header_branch
    %13 = sbr.rel (%p11) target = $region8
  $region5: #{linear1layer_forward.2} parent=0 // loop_body
    %s15 = ssub.s32 %s10, 1
    %s16 = ssub.s32 %s10, 2
    %s26 = sadd.s32 1, %s19
    %p27 = scmp.ge.s32.totalorder %s26, 1
    %s28 = scalar_select %p27, 0, %s26
    %s29 = sadd.s32 1, %s18
    %s30 = scalar_select %p27, %s29, %s18
    %p31 = scmp.ge.s32.totalorder %s30, 1
    %s32 = scalar_select %p31, 0, %s30
    %s33 = sadd.s32 1, %s17
    %s34 = scalar_select %p31, %s33, %s17
    %p35 = scmp.ge.s32.totalorder %s34, 2
    %s36 = scalar_select %p35, 0, %s34
    %s38 = sadd.s32 %s37, 1
    %p41 = scmp.eq.s32.totalorder %s10, 1
    %p42 = scmp.ne.s32.totalorder %s37, %s39
    %p43 = scmp.eq.s32.totalorder %s10, 0
    %p44 = por %p42, %p43
    %p45 = scmp.ne.s32.totalorder %s37, %s39
    %p46 = scmp.eq.s32.totalorder %s15, 1
    %p47 = por %p45, %p46
    %p48 = scmp.ne.s32.totalorder %s39, %s40
    %p49 = scmp.eq.s32.totalorder %s15, 0
    %p50 = por %p48, %p49
    %p51 = scmp.ne.s32.totalorder %s39, %s40
    %p52 = scmp.eq.s32.totalorder %s16, 1
    %p53 = por %p51, %p52
    %p55 = scmp.ne.s32.totalorder %s40, %s54
    %p56 = scmp.eq.s32.totalorder %s16, 0
    %p57 = por %p55, %p56
    %s58 = sadd.s32 %s17, %s18
    %s59 = sadd.s32 %s36, %s32
    %s60 = ssub.s32 %s58, %s59
    %s61 = ssub.s32 %s19, %s28
    %s62 = sor.u32 %s60, %s61
    %p63 = scmp.eq.s32.totalorder %s62, 0
    %s65 = sadd.s32 %s64, 1
    %s66 = scalar_select %p63, %s64, %s65
    %p69 = pneg %p63
    %p70 = scmp.eq.s32.totalorder %s10, 1
    %p71 = por %p69, %p70
    %p72 = scmp.ne.s32.totalorder %s64, %s67
    %p73 = scmp.eq.s32.totalorder %s10, 0
    %p74 = por %p72, %p73
    %p75 = scmp.ne.s32.totalorder %s64, %s67
    %p76 = scmp.eq.s32.totalorder %s15, 1
    %p77 = por %p75, %p76
    %p78 = scmp.ne.s32.totalorder %s67, %s68
    %p79 = scmp.eq.s32.totalorder %s15, 0
    %p80 = por %p78, %p79
    %p81 = scmp.ne.s32.totalorder %s67, %s68
    %p82 = scmp.eq.s32.totalorder %s16, 1
    %p83 = por %p81, %p82
    %p85 = scmp.ne.s32.totalorder %s68, %s84
    %p86 = scmp.eq.s32.totalorder %s16, 0
    %p87 = por %p85, %p86
    %s88 = ssub.s32 %s17, %s36
    %p89 = scmp.eq.s32.totalorder %s88, 0
    %s91 = sadd.s32 %s90, 1
    %s92 = scalar_select %p89, %s90, %s91
    %p95 = pneg %p89
    %p96 = scmp.eq.s32.totalorder %s10, 1
    %p97 = por %p95, %p96
    %p98 = scmp.ne.s32.totalorder %s90, %s93
    %p99 = scmp.eq.s32.totalorder %s10, 0
    %p100 = por %p98, %p99
    %p101 = scmp.ne.s32.totalorder %s90, %s93
    %p102 = scmp.eq.s32.totalorder %s15, 1
    %p103 = por %p101, %p102
    %p104 = scmp.ne.s32.totalorder %s93, %s94
    %p105 = scmp.eq.s32.totalorder %s15, 0
    %p106 = por %p104, %p105
    %p107 = scmp.ne.s32.totalorder %s93, %s94
    %p108 = scmp.eq.s32.totalorder %s16, 1
    %p109 = por %p107, %p108
    %p111 = scmp.ne.s32.totalorder %s94, %s110
    %p112 = scmp.eq.s32.totalorder %s16, 0
    %p113 = por %p111, %p112
    %s114 = ssub.s32 %s17, %s36
    %p115 = scmp.eq.s32.totalorder %s114, 0
    %s117 = sadd.s32 %s116, 1
    %s118 = scalar_select %p115, %s116, %s117
    %p121 = pneg %p115
    %p122 = scmp.eq.s32.totalorder %s10, 1
    %p123 = por %p121, %p122
    %p124 = scmp.ne.s32.totalorder %s116, %s119
    %p125 = scmp.eq.s32.totalorder %s10, 0
    %p126 = por %p124, %p125
    %p127 = scmp.ne.s32.totalorder %s116, %s119
    %p128 = scmp.eq.s32.totalorder %s15, 1
    %p129 = por %p127, %p128
    %p130 = scmp.ne.s32.totalorder %s119, %s120
    %p131 = scmp.eq.s32.totalorder %s15, 0
    %p132 = por %p130, %p131
    %p133 = scmp.ne.s32.totalorder %s119, %s120
    %p134 = scmp.eq.s32.totalorder %s16, 1
    %p135 = por %p133, %p134
    %p137 = scmp.ne.s32.totalorder %s120, %s136
    %p138 = scmp.eq.s32.totalorder %s16, 0
    %p139 = por %p137, %p138
    %p140 = scmp.le.s32.totalorder 1, %s10
    %p141 = scmp.lt.s32.totalorder %s10, 3
    %p142 = pnand %p140, %p141
    %p143 = pneg %p142
    // Predicated region
    $region9: #{linear1layer_forward.2} parent=5 // pred_check
      _
    $region10: #{linear1layer_forward.2} parent=5 // pred_check_branch
      %145 = sbr.rel (%p142) target = $region12
    $region11: #{linear1layer_forward.2} parent=5 // pred_region
      %s146 = ssub.s32 %s10, 1
      // Predicated region
      $region13: #{linear1layer_forward.2} parent=11 // pred_check
        %p147 = pneg %p50
      $region14: #{linear1layer_forward.2} parent=11 // pred_check_branch
        %149 = sbr.rel (%p147) target = $region16
      $region15: #{linear1layer_forward.2} parent=11 // pred_region
        _
      $region16: #{linear1layer_forward.2} parent=11 // pred_fallthru
        _
    $region12: #{linear1layer_forward.2} parent=5 // pred_fallthru
      _
    %p150 = scmp.lt.s32.totalorder %s10, 2
    // Predicated region
    $region17: #{linear1layer_forward.2} parent=5 // pred_check
      %p151 = pneg %p150
    $region18: #{linear1layer_forward.2} parent=5 // pred_check_branch
      %153 = sbr.rel (%p151) target = $region20
    $region19: #{linear1layer_forward.2} parent=5 // pred_region
      // Predicated region
      $region21: #{linear1layer_forward.2} parent=19 // pred_check
        %p154 = pneg %p74
      $region22: #{linear1layer_forward.2} parent=19 // pred_check_branch
        %156 = sbr.rel (%p154) target = $region24
      $region23: #{linear1layer_forward.2} parent=19 // pred_region
        %s157 = sadd.s32 %s17, %s18
        %p158 = scmp.lt.s32.totalorder %s157, 1
        %s159 = scalar_select %p158, %s157, 1
        %p160 = scmp.lt.s32.totalorder %s19, 0
        %s161 = scalar_select %p160, %s19, 0
        %s162 = sadd.s32 %s161, %s159
        %s163 = smul.addr %s162, 4
        %s164 = scalar_lea.vmem %s1, %s163
        %s165 = sadd.s32 %s17, %s18
      $region24: #{linear1layer_forward.2} parent=19 // pred_fallthru
        _
    $region20: #{linear1layer_forward.2} parent=5 // pred_fallthru
      _
    %p166 = scmp.le.s32.totalorder 1, %s10
    %p167 = scmp.lt.s32.totalorder %s10, 3
    %p168 = pnand %p166, %p167
    %p169 = pneg %p168
    // Predicated region
    $region25: #{linear1layer_forward.2} parent=5 // pred_check
      _
    $region26: #{linear1layer_forward.2} parent=5 // pred_check_branch
      %171 = sbr.rel (%p168) target = $region28
    $region27: #{linear1layer_forward.2} parent=5 // pred_region
      %s172 = ssub.s32 %s10, 1
      %p173 = pneg %p50
      %p174 = pneg %p47
      %s175 = sadd.s32 %s20, %s21
      %p176 = scmp.lt.s32.totalorder %s175, 1
      %s177 = scalar_select %p176, %s175, 1
      %p178 = scmp.lt.s32.totalorder %s22, 0
      %s179 = scalar_select %p178, %s22, 0
      %s180 = sadd.s32 %s179, %s177
      %s181 = smul.addr %s180, 4
      %s182 = scalar_lea.vmem %s1, %s181
      %p183 = pneg %p80
      %p184 = pneg %p77
      %p185 = pneg %p106
      %p186 = pneg %p103
      %p187 = scmp.lt.s32.totalorder %s20, 1
      %s188 = scalar_select %p187, %s20, 1
      %s189 = smul.addr %s188, 4
      %s190 = scalar_lea.vmem %s2, %s189
      %p191 = pneg %p132
      %p192 = pneg %p129
      %p193 = scmp.lt.s32.totalorder %s20, 1
      %s194 = scalar_select %p193, %s20, 1
      %s195 = smul.addr %s194, 4
      %s196 = scalar_lea.vmem %s3, %s195
      %s197 = sadd.s32 %s20, %s21
      %p198 = scmp.lt.s32.totalorder %s197, 1
      %s199 = scalar_select %p198, %s197, 1
      %p200 = scmp.lt.s32.totalorder %s22, 0
      %s201 = scalar_select %p200, %s22, 0
      %s202 = sadd.s32 %s201, %s199
      %s203 = smul.addr %s202, 4
      %s204 = scalar_lea.vmem %s1, %s203
      %s205 = sadd.s32 %s20, %s21
      %p206 = scmp.lt.s32.totalorder %s20, 1
      %s207 = scalar_select %p206, %s20, 1
      %s208 = smul.addr %s207, 4
      %s209 = scalar_lea.vmem %s2, %s208
      %p210 = scmp.lt.s32.totalorder %s20, 1
      %s211 = scalar_select %p210, %s20, 1
      %s212 = smul.addr %s211, 4
      %s213 = scalar_lea.vmem %s3, %s212
      %p214 = scmp.eq.s32.totalorder %s21, 0
      %p215 = scmp.eq.s32.totalorder %s22, 0
      %p216 = pnand %p214, %p215
      %p217 = pneg %p216
      // Predicated region
      $region29: #{linear1layer_forward.2} parent=27 // pred_check
        _
      $region30: #{linear1layer_forward.2} parent=27 // pred_check_branch
        %219 = sbr.rel (%p216) target = $region32
      $region31: #{linear1layer_forward.2} parent=27 // pred_region
        %vm220 = vcmask 3072
        %221 = vst.msk [vmem:[%s209] sm:$0xf] %vm220, 0.0
        %vm222 = vcmask 27648
        %223 = vst.msk [vmem:[%s213] sm:$0xf] %vm222, 0.0
      $region32: #{linear1layer_forward.2} parent=27 // pred_fallthru
        _
      %v224 = vld [vmem:[%s0] sm:$0xf]
      %v225 = vld [vmem:[%s204] sm:$0xf]
      %227 = vset.pattern.permute.xlu0 0
      %228 = vperm.xlu0 %227, %v224
      %v229 = vpop.permute.xlu0 %228
      %v231 = vsub.f32 %v225, %v229
      %v232 = vld [vmem:[%s209] sm:$0xf]
      %vm233 = vcmask 125952
      %v234 = vsel %vm233, %v231, 0.0
      %235 = vadd.xlane.f32.xlu0 %v234
      %v236 = vpop.xlane.xlu0 %235
      %v237 = vadd.f32 %v232, %v236
      %vm238 = vcmask 3072
      %239 = vst.msk [vmem:[%s209] sm:$0xf] %vm238, %v237
      %v240 = vld [vmem:[%s213] sm:$0xf]
      %vm241 = vcmask 130048
      %v243 = vsel %vm241, %v231, 0
      %245 = vmatprep.subr.mxu0 0.0
      %246 = vmatpush1.xpose.msra.mxu0 %v243
      %247 = vmatprep.subr.mxu0 0.0
      %248 = vmatpush1.xpose.msra.mxu0 0.0
      %249 = vmatprep.subr.mxu0 0.0
      %250 = vmatpush1.xpose.msra.mxu0 0.0
      %251 = vmatprep.subr.mxu0 0.0
      %252 = vmatpush1.xpose.msra.mxu0 0.0
      %253 = vmatprep.subr.mxu0 0.0
      %254 = vmatpush1.xpose.msra.mxu0 0.0
      %255 = vmatprep.subr.mxu0 0.0
      %256 = vmatpush1.xpose.msra.mxu0 0.0
      %257 = vmatprep.subr.mxu0 0.0
      %258 = vmatpush1.xpose.msra.mxu0 0.0
      %259 = vmatprep.subr.mxu0 0.0
      %260 = vmatpush1.xpose.msra.mxu0 0.0
      %261 = vmatprep.subr.mxu0 0.0
      %262 = vmatpush1.xpose.msra.mxu0 0.0
      %263 = vmatprep.subr.mxu0 0.0
      %264 = vmatpush1.xpose.msra.mxu0 0.0
      %265 = vmatprep.subr.mxu0 0.0
      %266 = vmatpush1.xpose.msra.mxu0 0.0
      %267 = vmatprep.subr.mxu0 0.0
      %268 = vmatpush1.xpose.msra.mxu0 0.0
      %269 = vmatprep.subr.mxu0 0.0
      %270 = vmatpush1.xpose.msra.mxu0 0.0
      %271 = vmatprep.subr.mxu0 0.0
      %272 = vmatpush1.xpose.msra.mxu0 0.0
      %273 = vmatprep.subr.mxu0 0.0
      %274 = vmatpush1.xpose.msra.mxu0 0.0
      %275 = vmatprep.subr.mxu0 0.0
      %276 = vmatpush1.xpose.msra.mxu0 0.0
      %277 = vmatprep.subr.mxu0 0.0
      %278 = vmatpush1.xpose.msra.mxu0 0.0
      %279 = vmatprep.subr.mxu0 0.0
      %280 = vmatpush1.xpose.msra.mxu0 0.0
      %281 = vmatprep.subr.mxu0 0.0
      %282 = vmatpush1.xpose.msra.mxu0 0.0
      %283 = vmatprep.subr.mxu0 0.0
      %284 = vmatpush1.xpose.msra.mxu0 0.0
      %285 = vmatprep.subr.mxu0 0.0
      %286 = vmatpush1.xpose.msra.mxu0 0.0
      %287 = vmatprep.subr.mxu0 0.0
      %288 = vmatpush1.xpose.msra.mxu0 0.0
      %289 = vmatprep.subr.mxu0 0.0
      %290 = vmatpush1.xpose.msra.mxu0 0.0
      %291 = vmatprep.subr.mxu0 0.0
      %292 = vmatpush1.xpose.msra.mxu0 0.0
      %293 = vmatprep.subr.mxu0 0.0
      %294 = vmatpush1.xpose.msra.mxu0 0.0
      %295 = vmatprep.subr.mxu0 0.0
      %296 = vmatpush1.xpose.msra.mxu0 0.0
      %297 = vmatprep.subr.mxu0 0.0
      %298 = vmatpush1.xpose.msra.mxu0 0.0
      %299 = vmatprep.subr.mxu0 0.0
      %300 = vmatpush1.xpose.msra.mxu0 0.0
      %301 = vmatprep.subr.mxu0 0.0
      %302 = vmatpush1.xpose.msra.mxu0 0.0
      %303 = vmatprep.subr.mxu0 0.0
      %304 = vmatpush1.xpose.msra.mxu0 0.0
      %305 = vmatprep.subr.mxu0 0.0
      %306 = vmatpush1.xpose.msra.mxu0 0.0
      %307 = vmatprep.subr.mxu0 0.0
      %308 = vmatpush1.xpose.msra.mxu0 0.0
      %309 = vmatprep.mubr.f32.mxu0 0.0
      %310 = vmatmul.mubr.f32.gmra.mrb[0].mxu0 %v243
      %v311 = vpop.f32.mrb[0].mxu0
      %v312 = vadd.f32 0.0, %v311
      %v313 = vpop.f32.mrb[0].mxu0
      %314 = vdwg.mxu0
      %v315 = vadd.f32 %v240, %v312
      %vm316 = vcmask 27648
      %317 = vst.msk [vmem:[%s213] sm:$0xf] %vm316, %v315
      %p318 = scmp.lt.s32.totalorder %s20, 1
      %s319 = scalar_select %p318, %s20, 1
      %s320 = smul.addr %s319, 4
      %s321 = scalar_lea.vmem %s2, %s320
      %p322 = scmp.lt.s32.totalorder %s20, 1
      %s323 = scalar_select %p322, %s20, 1
      %s324 = smul.addr %s323, 4
      %s325 = scalar_lea.vmem %s3, %s324
      // Predicated region
      $region33: #{linear1layer_forward.2} parent=27 // pred_check
        %p326 = pneg %p103
      $region34: #{linear1layer_forward.2} parent=27 // pred_check_branch
        %328 = sbr.rel (%p326) target = $region36
      $region35: #{linear1layer_forward.2} parent=27 // pred_region
        _
      $region36: #{linear1layer_forward.2} parent=27 // pred_fallthru
        _
      // Predicated region
      $region37: #{linear1layer_forward.2} parent=27 // pred_check
        %p329 = pneg %p129
      $region38: #{linear1layer_forward.2} parent=27 // pred_check_branch
        %331 = sbr.rel (%p329) target = $region40
      $region39: #{linear1layer_forward.2} parent=27 // pred_region
        _
      $region40: #{linear1layer_forward.2} parent=27 // pred_fallthru
        _
    $region28: #{linear1layer_forward.2} parent=5 // pred_fallthru
      _
    %p332 = scmp.le.s32.totalorder 2, %s10
    // Predicated region
    $region41: #{linear1layer_forward.2} parent=5 // pred_check
      %p333 = pneg %p332
    $region42: #{linear1layer_forward.2} parent=5 // pred_check_branch
      %335 = sbr.rel (%p333) target = $region44
    $region43: #{linear1layer_forward.2} parent=5 // pred_region
      %s336 = ssub.s32 %s10, 2
      // Predicated region
      $region45: #{linear1layer_forward.2} parent=43 // pred_check
        %p337 = pneg %p109
      $region46: #{linear1layer_forward.2} parent=43 // pred_check_branch
        %339 = sbr.rel (%p337) target = $region48
      $region47: #{linear1layer_forward.2} parent=43 // pred_region
        %p340 = scmp.lt.s32.totalorder %s23, 1
        %s341 = scalar_select %p340, %s23, 1
        %s342 = smul.addr %s341, 4
        %s343 = scalar_lea.vmem %s2, %s342
      $region48: #{linear1layer_forward.2} parent=43 // pred_fallthru
        _
      // Predicated region
      $region49: #{linear1layer_forward.2} parent=43 // pred_check
        %p344 = pneg %p135
      $region50: #{linear1layer_forward.2} parent=43 // pred_check_branch
        %346 = sbr.rel (%p344) target = $region52
      $region51: #{linear1layer_forward.2} parent=43 // pred_region
        %p347 = scmp.lt.s32.totalorder %s23, 1
        %s348 = scalar_select %p347, %s23, 1
        %s349 = smul.addr %s348, 4
        %s350 = scalar_lea.vmem %s3, %s349
      $region52: #{linear1layer_forward.2} parent=43 // pred_fallthru
        _
    $region44: #{linear1layer_forward.2} parent=5 // pred_fallthru
      _
  $region6: #{linear1layer_forward.2} parent=0 // loop_footer
    %s14 = sadd.s32 1, %s10
  $region7: #{linear1layer_forward.2} parent=0 // loop_footer_branch
    %9 = sbr.rel target = $region3
  $region8: #{linear1layer_forward.2} parent=0 // loop_exit
    _

// kernel: linear1layer_forward.3
$region0: #{linear1layer_forward.3}
  #allocation0 [shape = 'u32[]', space=smem, size = 0x4, offset = 0x4, fixed_abs, tag = 'smem constant byte address 0x4 - core index']
  #allocation1 [shape = 'u32[144,128]{1,0:T(1,128)}', space=vmem, size = 0x12000, scoped, tag = 'internal scratch']
  %s0 = inlined_call_operand.vmem [shape: f32[32,4], index: 0, kind: input, shape index: {}]
  %s1 = inlined_call_operand.vmem [shape: f32[32,1], index: 1, kind: input, shape index: {}]
  %s2 = inlined_call_operand.vmem [shape: f32[2,4,16], index: 2, kind: input, shape index: {}]
  %s3 = inlined_call_operand.vmem [shape: f32[2,32,16], index: 3, kind: output, shape index: {}]
  %s4 = sld [smem:[#allocation0]]
  $region45: #{linear1layer_forward.3} parent=0
    _
  %s6 = ssub.s32 1, %s4
  %s7 = scalar_select 0, %s6, %s4
  loop: start=0, step=1, limit=4
  $region2: #{linear1layer_forward.3} parent=0 // loop_pre_header
    _
  $region3: #{linear1layer_forward.3} parent=0 // loop_header
    %s9 = sphi 0, %s13
    %p10 = scmp.ge.s32.totalorder %s9, 4
    %s16 = sphi 0, %s28
    %s17 = sphi 0, %s24
    %s18 = sphi 0, %s16
    %s19 = sphi 0, %s17
    %s20 = sphi 0, %s18
    %s21 = sphi 0, %s19
    %s29 = sphi 0, %s29
    %s31 = sphi 0, %s29
    %s32 = sphi 0, %s31
    %s46 = sphi 0, %s32
    %s50 = sphi 0, %s50
    %s52 = sphi 0, %s50
    %s53 = sphi 0, %s52
    %s67 = sphi 0, %s53
    %s75 = sphi 0, %s77
    %s78 = sphi 0, %s75
    %s79 = sphi 0, %s78
    %s95 = sphi 0, %s79
    %s103 = sphi 0, %s105
    %s106 = sphi 0, %s103
    %s107 = sphi 0, %s106
    %s123 = sphi 0, %s107
  $region4: #{linear1layer_forward.3} parent=0 // loop_header_branch
    %12 = sbr.rel (%p10) target = $region8
  $region5: #{linear1layer_forward.3} parent=0 // loop_body
    %s14 = ssub.s32 %s9, 1
    %s15 = ssub.s32 %s9, 2
    %s22 = sadd.s32 1, %s17
    %p23 = scmp.ge.s32.totalorder %s22, 1
    %s24 = scalar_select %p23, 0, %s22
    %s25 = sadd.s32 1, %s16
    %s26 = scalar_select %p23, %s25, %s16
    %p27 = scmp.ge.s32.totalorder %s26, 2
    %s28 = scalar_select %p27, 0, %s26
    %s30 = sadd.s32 %s29, 1
    %p33 = scmp.eq.s32.totalorder %s9, 1
    %p34 = scmp.ne.s32.totalorder %s29, %s31
    %p35 = scmp.eq.s32.totalorder %s9, 0
    %p36 = por %p34, %p35
    %p37 = scmp.ne.s32.totalorder %s29, %s31
    %p38 = scmp.eq.s32.totalorder %s14, 1
    %p39 = por %p37, %p38
    %p40 = scmp.ne.s32.totalorder %s31, %s32
    %p41 = scmp.eq.s32.totalorder %s14, 0
    %p42 = por %p40, %p41
    %p43 = scmp.ne.s32.totalorder %s31, %s32
    %p44 = scmp.eq.s32.totalorder %s15, 1
    %p45 = por %p43, %p44
    %p47 = scmp.ne.s32.totalorder %s32, %s46
    %p48 = scmp.eq.s32.totalorder %s15, 0
    %p49 = por %p47, %p48
    %s51 = sadd.s32 %s50, 1
    %p54 = scmp.eq.s32.totalorder %s9, 1
    %p55 = scmp.ne.s32.totalorder %s50, %s52
    %p56 = scmp.eq.s32.totalorder %s9, 0
    %p57 = por %p55, %p56
    %p58 = scmp.ne.s32.totalorder %s50, %s52
    %p59 = scmp.eq.s32.totalorder %s14, 1
    %p60 = por %p58, %p59
    %p61 = scmp.ne.s32.totalorder %s52, %s53
    %p62 = scmp.eq.s32.totalorder %s14, 0
    %p63 = por %p61, %p62
    %p64 = scmp.ne.s32.totalorder %s52, %s53
    %p65 = scmp.eq.s32.totalorder %s15, 1
    %p66 = por %p64, %p65
    %p68 = scmp.ne.s32.totalorder %s53, %s67
    %p69 = scmp.eq.s32.totalorder %s15, 0
    %p70 = por %p68, %p69
    %s71 = ssub.s32 %s16, %s28
    %s72 = ssub.s32 %s17, %s24
    %s73 = sor.u32 %s71, %s72
    %p74 = scmp.eq.s32.totalorder %s73, 0
    %s76 = sadd.s32 %s75, 1
    %s77 = scalar_select %p74, %s75, %s76
    %p80 = pneg %p74
    %p81 = scmp.eq.s32.totalorder %s9, 1
    %p82 = por %p80, %p81
    %p83 = scmp.ne.s32.totalorder %s75, %s78
    %p84 = scmp.eq.s32.totalorder %s9, 0
    %p85 = por %p83, %p84
    %p86 = scmp.ne.s32.totalorder %s75, %s78
    %p87 = scmp.eq.s32.totalorder %s14, 1
    %p88 = por %p86, %p87
    %p89 = scmp.ne.s32.totalorder %s78, %s79
    %p90 = scmp.eq.s32.totalorder %s14, 0
    %p91 = por %p89, %p90
    %p92 = scmp.ne.s32.totalorder %s78, %s79
    %p93 = scmp.eq.s32.totalorder %s15, 1
    %p94 = por %p92, %p93
    %p96 = scmp.ne.s32.totalorder %s79, %s95
    %p97 = scmp.eq.s32.totalorder %s15, 0
    %p98 = por %p96, %p97
    %s99 = ssub.s32 %s16, %s28
    %s100 = ssub.s32 %s17, %s24
    %s101 = sor.u32 %s99, %s100
    %p102 = scmp.eq.s32.totalorder %s101, 0
    %s104 = sadd.s32 %s103, 1
    %s105 = scalar_select %p102, %s103, %s104
    %p108 = pneg %p102
    %p109 = scmp.eq.s32.totalorder %s9, 1
    %p110 = por %p108, %p109
    %p111 = scmp.ne.s32.totalorder %s103, %s106
    %p112 = scmp.eq.s32.totalorder %s9, 0
    %p113 = por %p111, %p112
    %p114 = scmp.ne.s32.totalorder %s103, %s106
    %p115 = scmp.eq.s32.totalorder %s14, 1
    %p116 = por %p114, %p115
    %p117 = scmp.ne.s32.totalorder %s106, %s107
    %p118 = scmp.eq.s32.totalorder %s14, 0
    %p119 = por %p117, %p118
    %p120 = scmp.ne.s32.totalorder %s106, %s107
    %p121 = scmp.eq.s32.totalorder %s15, 1
    %p122 = por %p120, %p121
    %p124 = scmp.ne.s32.totalorder %s107, %s123
    %p125 = scmp.eq.s32.totalorder %s15, 0
    %p126 = por %p124, %p125
    %p127 = scmp.le.s32.totalorder 1, %s9
    %p128 = scmp.lt.s32.totalorder %s9, 3
    %p129 = pnand %p127, %p128
    %p130 = pneg %p129
    // Predicated region
    $region9: #{linear1layer_forward.3} parent=5 // pred_check
      _
    $region10: #{linear1layer_forward.3} parent=5 // pred_check_branch
      %132 = sbr.rel (%p129) target = $region12
    $region11: #{linear1layer_forward.3} parent=5 // pred_region
      %s133 = ssub.s32 %s9, 1
      // Predicated region
      $region13: #{linear1layer_forward.3} parent=11 // pred_check
        %p134 = pneg %p42
      $region14: #{linear1layer_forward.3} parent=11 // pred_check_branch
        %136 = sbr.rel (%p134) target = $region16
      $region15: #{linear1layer_forward.3} parent=11 // pred_region
        _
      $region16: #{linear1layer_forward.3} parent=11 // pred_fallthru
        _
      // Predicated region
      $region17: #{linear1layer_forward.3} parent=11 // pred_check
        %p137 = pneg %p63
      $region18: #{linear1layer_forward.3} parent=11 // pred_check_branch
        %139 = sbr.rel (%p137) target = $region20
      $region19: #{linear1layer_forward.3} parent=11 // pred_region
        _
      $region20: #{linear1layer_forward.3} parent=11 // pred_fallthru
        _
    $region12: #{linear1layer_forward.3} parent=5 // pred_fallthru
      _
    %p140 = scmp.lt.s32.totalorder %s9, 2
    // Predicated region
    $region21: #{linear1layer_forward.3} parent=5 // pred_check
      %p141 = pneg %p140
    $region22: #{linear1layer_forward.3} parent=5 // pred_check_branch
      %143 = sbr.rel (%p141) target = $region24
    $region23: #{linear1layer_forward.3} parent=5 // pred_region
      // Predicated region
      $region25: #{linear1layer_forward.3} parent=23 // pred_check
        %p144 = pneg %p85
      $region26: #{linear1layer_forward.3} parent=23 // pred_check_branch
        %146 = sbr.rel (%p144) target = $region28
      $region27: #{linear1layer_forward.3} parent=23 // pred_region
        %p147 = scmp.lt.s32.totalorder %s16, 1
        %s148 = scalar_select %p147, %s16, 1
        %p149 = scmp.lt.s32.totalorder %s17, 0
        %s150 = scalar_select %p149, %s17, 0
        %s151 = sadd.s32 %s150, %s148
        %s152 = smul.addr %s151, 4
        %s153 = scalar_lea.vmem %s2, %s152
      $region28: #{linear1layer_forward.3} parent=23 // pred_fallthru
        _
    $region24: #{linear1layer_forward.3} parent=5 // pred_fallthru
      _
    %p154 = scmp.le.s32.totalorder 1, %s9
    %p155 = scmp.lt.s32.totalorder %s9, 3
    %p156 = pnand %p154, %p155
    %p157 = pneg %p156
    // Predicated region
    $region29: #{linear1layer_forward.3} parent=5 // pred_check
      _
    $region30: #{linear1layer_forward.3} parent=5 // pred_check_branch
      %159 = sbr.rel (%p156) target = $region32
    $region31: #{linear1layer_forward.3} parent=5 // pred_region
      %s160 = ssub.s32 %s9, 1
      %p161 = pneg %p42
      %p162 = pneg %p39
      %p163 = pneg %p63
      %p164 = pneg %p60
      %p165 = scmp.lt.s32.totalorder %s18, 1
      %s166 = scalar_select %p165, %s18, 1
      %p167 = scmp.lt.s32.totalorder %s19, 0
      %s168 = scalar_select %p167, %s19, 0
      %s169 = sadd.s32 %s168, %s166
      %s170 = smul.addr %s169, 4
      %s171 = scalar_lea.vmem %s2, %s170
      %p172 = pneg %p91
      %p173 = pneg %p88
      %p174 = pneg %p119
      %p175 = pneg %p116
      %p176 = scmp.lt.s32.totalorder %s18, 1
      %s177 = scalar_select %p176, %s18, 1
      %p178 = scmp.lt.s32.totalorder %s19, 0
      %s179 = scalar_select %p178, %s19, 0
      %s180 = smul.addr %s177, 4
      %s181 = sadd.s32 %s179, %s180
      %s182 = smul.addr %s181, 8
      %s183 = scalar_lea.vmem %s3, %s182
      %p184 = scmp.lt.s32.totalorder %s18, 1
      %s185 = scalar_select %p184, %s18, 1
      %p186 = scmp.lt.s32.totalorder %s19, 0
      %s187 = scalar_select %p186, %s19, 0
      %s188 = sadd.s32 %s187, %s185
      %s189 = smul.addr %s188, 4
      %s190 = scalar_lea.vmem %s2, %s189
      %p191 = scmp.lt.s32.totalorder %s18, 1
      %s192 = scalar_select %p191, %s18, 1
      %p193 = scmp.lt.s32.totalorder %s19, 0
      %s194 = scalar_select %p193, %s19, 0
      %s195 = smul.addr %s192, 4
      %s196 = sadd.s32 %s194, %s195
      %s197 = smul.addr %s196, 8
      %s198 = scalar_lea.vmem %s3, %s197
      %v199 = vld [vmem:[%s0] sm:$0xff]
      %v200 = vld [vmem:[%s0 + $0x8] sm:$0xff]
      %v201 = vld [vmem:[%s0 + $0x10] sm:$0xff]
      %v202 = vld [vmem:[%s0 + $0x18] sm:$0xff]
      %v203 = vld [vmem:[%s1] sm:$0xff]
      %v204 = vld [vmem:[%s1 + $0x8] sm:$0xff]
      %v205 = vld [vmem:[%s1 + $0x10] sm:$0xff]
      %v206 = vld [vmem:[%s1 + $0x18] sm:$0xff]
      %v207 = vld [vmem:[%s190] sm:$0xf]
      %209 = vset.pattern.permute.xlu0 0
      %210 = vperm.xlu0 %209, %v203
      %v211 = vpop.permute.xlu0 %210
      %214 = vset.pattern.permute.xlu0 0
      %215 = vperm.xlu0 %214, %v204
      %v216 = vpop.permute.xlu0 %215
      %219 = vset.pattern.permute.xlu0 0
      %220 = vperm.xlu0 %219, %v205
      %v221 = vpop.permute.xlu0 %220
      %224 = vset.pattern.permute.xlu0 0
      %225 = vperm.xlu0 %224, %v206
      %v226 = vpop.permute.xlu0 %225
      %vm228 = vcmask 31744
      %v230 = vsel %vm228, %v199, 0
      %v233 = vsel %vm228, %v200, 0
      %v236 = vsel %vm228, %v201, 0
      %v239 = vsel %vm228, %v202, 0
      %vm241 = vcmask 1043456
      %v243 = vsel %vm241, %v207, 0
      %245 = vmatprep.subr.mxu0 0.0
      %246 = vmatpush1.msra.mxu0 %v243
      %247 = vmatprep.subr.mxu0 0.0
      %248 = vmatpush1.msra.mxu0 0.0
      %249 = vmatprep.subr.mxu0 0.0
      %250 = vmatpush1.msra.mxu0 0.0
      %251 = vmatprep.subr.mxu0 0.0
      %252 = vmatpush1.msra.mxu0 0.0
      %253 = vmatprep.subr.mxu0 0.0
      %254 = vmatpush1.msra.mxu0 0.0
      %255 = vmatprep.subr.mxu0 0.0
      %256 = vmatpush1.msra.mxu0 0.0
      %257 = vmatprep.subr.mxu0 0.0
      %258 = vmatpush1.msra.mxu0 0.0
      %259 = vmatprep.subr.mxu0 0.0
      %260 = vmatpush1.msra.mxu0 0.0
      %261 = vmatprep.subr.mxu0 0.0
      %262 = vmatpush1.msra.mxu0 0.0
      %263 = vmatprep.subr.mxu0 0.0
      %264 = vmatpush1.msra.mxu0 0.0
      %265 = vmatprep.subr.mxu0 0.0
      %266 = vmatpush1.msra.mxu0 0.0
      %267 = vmatprep.subr.mxu0 0.0
      %268 = vmatpush1.msra.mxu0 0.0
      %269 = vmatprep.subr.mxu0 0.0
      %270 = vmatpush1.msra.mxu0 0.0
      %271 = vmatprep.subr.mxu0 0.0
      %272 = vmatpush1.msra.mxu0 0.0
      %273 = vmatprep.subr.mxu0 0.0
      %274 = vmatpush1.msra.mxu0 0.0
      %275 = vmatprep.subr.mxu0 0.0
      %276 = vmatpush1.msra.mxu0 0.0
      %277 = vmatprep.subr.mxu0 0.0
      %278 = vmatpush1.msra.mxu0 0.0
      %279 = vmatprep.subr.mxu0 0.0
      %280 = vmatpush1.msra.mxu0 0.0
      %281 = vmatprep.subr.mxu0 0.0
      %282 = vmatpush1.msra.mxu0 0.0
      %283 = vmatprep.subr.mxu0 0.0
      %284 = vmatpush1.msra.mxu0 0.0
      %285 = vmatprep.subr.mxu0 0.0
      %286 = vmatpush1.msra.mxu0 0.0
      %287 = vmatprep.subr.mxu0 0.0
      %288 = vmatpush1.msra.mxu0 0.0
      %289 = vmatprep.subr.mxu0 0.0
      %290 = vmatpush1.msra.mxu0 0.0
      %291 = vmatprep.subr.mxu0 0.0
      %292 = vmatpush1.msra.mxu0 0.0
      %293 = vmatprep.subr.mxu0 0.0
      %294 = vmatpush1.msra.mxu0 0.0
      %295 = vmatprep.subr.mxu0 0.0
      %296 = vmatpush1.msra.mxu0 0.0
      %297 = vmatprep.subr.mxu0 0.0
      %298 = vmatpush1.msra.mxu0 0.0
      %299 = vmatprep.subr.mxu0 0.0
      %300 = vmatpush1.msra.mxu0 0.0
      %301 = vmatprep.subr.mxu0 0.0
      %302 = vmatpush1.msra.mxu0 0.0
      %303 = vmatprep.subr.mxu0 0.0
      %304 = vmatpush1.msra.mxu0 0.0
      %305 = vmatprep.subr.mxu0 0.0
      %306 = vmatpush1.msra.mxu0 0.0
      %307 = vmatprep.subr.mxu0 0.0
      %308 = vmatpush1.msra.mxu0 0.0
      %309 = vmatprep.mubr.f32.mxu0 0.0
      %310 = vmatmul.mubr.f32.gmra.mrb[0].mxu0 %v230
      %v311 = vpop.f32.mrb[0].mxu0
      %v312 = vadd.f32 %v211, %v311
      %v313 = vpop.f32.mrb[0].mxu0
      %314 = vmatprep.mubr.f32.mxu0 0.0
      %315 = vmatmul.mubr.f32.gmra.mrb[0].mxu0 %v233
      %v316 = vpop.f32.mrb[0].mxu0
      %v317 = vadd.f32 %v216, %v316
      %v318 = vpop.f32.mrb[0].mxu0
      %319 = vmatprep.mubr.f32.mxu0 0.0
      %320 = vmatmul.mubr.f32.gmra.mrb[0].mxu0 %v236
      %v321 = vpop.f32.mrb[0].mxu0
      %v322 = vadd.f32 %v221, %v321
      %v323 = vpop.f32.mrb[0].mxu0
      %324 = vmatprep.mubr.f32.mxu0 0.0
      %325 = vmatmul.mubr.f32.gmra.mrb[0].mxu0 %v239
      %v326 = vpop.f32.mrb[0].mxu0
      %v327 = vadd.f32 %v226, %v326
      %v328 = vpop.f32.mrb[0].mxu0
      %329 = vdwg.mxu0
      %v330 = vmax.f32 %v312, 0.0
      %v331 = vmax.f32 %v317, 0.0
      %v332 = vmax.f32 %v322, 0.0
      %v333 = vmax.f32 %v327, 0.0
      %vm334 = vcmask 130048
      %335 = vst.msk [vmem:[%s198] sm:$0xff] %vm334, %v330
      %336 = vst.msk [vmem:[%s198 + $0x8] sm:$0xff] %vm334, %v331
      %337 = vst.msk [vmem:[%s198 + $0x10] sm:$0xff] %vm334, %v332
      %338 = vst.msk [vmem:[%s198 + $0x18] sm:$0xff] %vm334, %v333
      %p339 = scmp.lt.s32.totalorder %s18, 1
      %s340 = scalar_select %p339, %s18, 1
      %p341 = scmp.lt.s32.totalorder %s19, 0
      %s342 = scalar_select %p341, %s19, 0
      %s343 = smul.addr %s340, 4
      %s344 = sadd.s32 %s342, %s343
      %s345 = smul.addr %s344, 8
      %s346 = scalar_lea.vmem %s3, %s345
      // Predicated region
      $region33: #{linear1layer_forward.3} parent=31 // pred_check
        %p347 = pneg %p116
      $region34: #{linear1layer_forward.3} parent=31 // pred_check_branch
        %349 = sbr.rel (%p347) target = $region36
      $region35: #{linear1layer_forward.3} parent=31 // pred_region
        _
      $region36: #{linear1layer_forward.3} parent=31 // pred_fallthru
        _
    $region32: #{linear1layer_forward.3} parent=5 // pred_fallthru
      _
    %p350 = scmp.le.s32.totalorder 2, %s9
    // Predicated region
    $region37: #{linear1layer_forward.3} parent=5 // pred_check
      %p351 = pneg %p350
    $region38: #{linear1layer_forward.3} parent=5 // pred_check_branch
      %353 = sbr.rel (%p351) target = $region40
    $region39: #{linear1layer_forward.3} parent=5 // pred_region
      %s354 = ssub.s32 %s9, 2
      // Predicated region
      $region41: #{linear1layer_forward.3} parent=39 // pred_check
        %p355 = pneg %p122
      $region42: #{linear1layer_forward.3} parent=39 // pred_check_branch
        %357 = sbr.rel (%p355) target = $region44
      $region43: #{linear1layer_forward.3} parent=39 // pred_region
        %p358 = scmp.lt.s32.totalorder %s20, 1
        %s359 = scalar_select %p358, %s20, 1
        %p360 = scmp.lt.s32.totalorder %s21, 0
        %s361 = scalar_select %p360, %s21, 0
        %s362 = smul.addr %s359, 4
        %s363 = sadd.s32 %s361, %s362
        %s364 = smul.addr %s363, 8
        %s365 = scalar_lea.vmem %s3, %s364
      $region44: #{linear1layer_forward.3} parent=39 // pred_fallthru
        _
    $region40: #{linear1layer_forward.3} parent=5 // pred_fallthru
      _
  $region6: #{linear1layer_forward.3} parent=0 // loop_footer
    %s13 = sadd.s32 1, %s9
  $region7: #{linear1layer_forward.3} parent=0 // loop_footer_branch
    %8 = sbr.rel target = $region3
  $region8: #{linear1layer_forward.3} parent=0 // loop_exit
    _

</llo_original>
